<compile_context>
chip_gen: v5e
topology: v5e:2x2
jax: 0.10.0
libtpu: 0.0.40
codegen_flags: <defaults>
</compile_context>

<pallas_src>
import functools

import jax
import jax.numpy as jnp
from jax.experimental import pallas as pl
from jax.experimental.pallas import tpu as pltpu

N_LAYERS = 3
LATENT_DIM = 64
FUSED_MAX_N = 2048      # G (bf16) <= 8 MiB -> hold it in VMEM for all 3 layers


# ---------------------------------------------------------------------------
# Fused small-N kernel: all 3 propagation layers + layer mean in one call.
# G stays resident in VMEM; embeddings are cast to bf16 only inside the kernel
# (VPU cast, no extra HBM pass); accumulation is f32.
# ---------------------------------------------------------------------------
def _fused_propagate_kernel(g_ref, e_ref, o_ref):
    g = g_ref[...]                     # [N, N] bf16, resident
    cur = e_ref[...]                   # [N, D] f32 (layer-0 term)
    acc = cur
    for _ in range(N_LAYERS):
        cur = jnp.dot(g, cur.astype(jnp.bfloat16),
                      preferred_element_type=jnp.float32)
        acc = acc + cur
    o_ref[...] = acc * (1.0 / (N_LAYERS + 1))


def fused_propagate(g_bf16, e0_f32):
    n, d = e0_f32.shape
    # Single-buffered (no grid): G + a handful of [N, D] f32 temporaries.
    budget = n * n * 2 + 8 * n * d * 4
    vmem_limit = int(min(64 << 20, budget + (16 << 20)))
    return pl.pallas_call(
        _fused_propagate_kernel,
        out_shape=jax.ShapeDtypeStruct((n, d), jnp.float32),
        compiler_params=pltpu.CompilerParams(vmem_limit_bytes=vmem_limit),
    )(g_bf16, e0_f32)


# ---------------------------------------------------------------------------
# Tiled large-N kernel: one layer  out = G @ x  as a pipelined K-reduction.
# Output block is resident over K (accumulated in place, f32); X is either
# fully VMEM-resident (sliced by K inside the kernel) or streamed per-K-block.
# A second bf16 output provides the next layer's input without an XLA cast.
# ---------------------------------------------------------------------------
def _propagate_kernel(g_ref, x_ref, o_ref, onext_ref, *, tk, x_resident):
    k = pl.program_id(1)

    @pl.when(k == 0)
    def _():
        o_ref[...] = jnp.zeros_like(o_ref)

    if x_resident:
        start = pl.multiple_of(k * tk, tk)
        x_blk = x_ref[pl.ds(start, tk), :]          # [tk, D] slice of resident X
    else:
        x_blk = x_ref[...]                          # streamed [tk, D] block

    o_ref[...] += jnp.dot(g_ref[...], x_blk, preferred_element_type=jnp.float32)

    @pl.when(k == pl.num_programs(1) - 1)
    def _():
        onext_ref[...] = o_ref[...].astype(jnp.bfloat16)


def _pick_tile(n, prefs):
    """Largest preferred lane-dense tile that evenly divides n."""
    for t in prefs:
        if n >= t and n % t == 0:
            return t
    return n


def _g_spec(tm, tk, depth=3):
    """G BlockSpec with deeper input pipelining when the jax version supports it."""
    buffered = getattr(pl, "Buffered", None)
    if buffered is not None:
        try:
            return pl.BlockSpec((tm, tk), lambda i, k: (i, k),
                                pipeline_mode=buffered(depth))
        except TypeError:
            pass
    return pl.BlockSpec((tm, tk), lambda i, k: (i, k))


def propagate_layer(g_bf16, x_bf16, *, tm=None, tk=None):
    """(f32 out, bf16 out) [N, D] = g_bf16[N, N] @ x_bf16[N, D]."""
    n, d = x_bf16.shape

    if tm is None:
        tm = _pick_tile(n, (1024, 512, 256, 128))
        # v7x megacore: make sure the "parallel" row axis has >= 2 blocks.
        while n // tm < 2 and tm > 128:
            tm //= 2
    if tk is None:
        tk = _pick_tile(n, (2048, 1024, 512, 256, 128))
    if n % tm or n % tk:
        # TODO(synk): pad N up to a multiple of 128 for irregular graph sizes
        # instead of falling back to a single full-array block.
        tm = tk = n

    # X resident in VMEM when it is small enough (DMA'd once per kernel).
    x_resident = (n * d * 2) <= (8 << 20)
    if x_resident:
        x_spec = pl.BlockSpec((n, d), lambda i, k: (0, 0))
    else:
        x_spec = pl.BlockSpec((tk, d), lambda i, k: (k, 0))

    # VMEM budget from the actual buffer counts (fits v7x's 64 MiB/TC):
    #   G: 3 buffers (Buffered(3)); X: 2 (conservative, DMA'd once if resident);
    #   f32 + bf16 outputs: 2 buffers each.
    g_bytes = 3 * tm * tk * 2
    x_bytes = (2 * n * d * 2) if x_resident else (2 * tk * d * 2)
    o_bytes = 2 * tm * d * (4 + 2)
    vmem_limit = int(min(64 << 20, g_bytes + x_bytes + o_bytes + (16 << 20)))

    kernel = functools.partial(_propagate_kernel, tk=tk, x_resident=x_resident)

    return pl.pallas_call(
        kernel,
        out_shape=(jax.ShapeDtypeStruct((n, d), jnp.float32),
                   jax.ShapeDtypeStruct((n, d), jnp.bfloat16)),
        grid=(n // tm, n // tk),                                  # reduction last
        in_specs=[_g_spec(tm, tk), x_spec],
        out_specs=(pl.BlockSpec((tm, d), lambda i, k: (i, 0)),    # resident over k
                   pl.BlockSpec((tm, d), lambda i, k: (i, 0))),
        compiler_params=pltpu.CompilerParams(
            dimension_semantics=("parallel", "arbitrary"),
            vmem_limit_bytes=vmem_limit,
        ),
    )(g_bf16, x_bf16)


# ---------------------------------------------------------------------------
# Full forward:  computer()  +  gather  +  per-pair dot product
# The caller pre-casts the adjacency to bf16 ONCE at setup (hoisted N^2 pass).
# ---------------------------------------------------------------------------
@functools.partial(jax.jit, static_argnames=("num_users",))
def lightgcn_forward(graph_bf16, user_emb, item_emb, users, items, *, num_users):
    # No-op when the caller already passes bf16 (the intended usage); guard only.
    graph_bf16 = graph_bf16.astype(jnp.bfloat16)

    all_emb = jnp.concatenate([user_emb, item_emb], axis=0)        # [N, D] f32
    n, _ = all_emb.shape

    if n <= FUSED_MAX_N:
        # One kernel: G read once from HBM, all 3 layers + mean fused.
        light_out = fused_propagate(graph_bf16, all_emb)
    else:
        light_out = all_emb                                        # layer-0 term
        cur_bf16 = all_emb.astype(jnp.bfloat16)
        for _ in range(N_LAYERS):
            cur_f32, cur_bf16 = propagate_layer(graph_bf16, cur_bf16)
            light_out = light_out + cur_f32
        light_out = light_out * (1.0 / (N_LAYERS + 1))             # mean of 4 terms

    # Gather + score: ~1 vreg of work at this batch size; leave to XLA fusion.
    all_users = light_out[:num_users]
    all_items = light_out[num_users:]
    users_emb = all_users[users]
    items_emb = all_items[items]
    return jnp.sum(users_emb * items_emb, axis=-1)                 # gamma [B]


# ---------------------------------------------------------------------------
# Deterministic parameter / graph construction (synthetic, no checkpoints)
# ---------------------------------------------------------------------------
def build_params(key, num_users, num_items, latent_dim=LATENT_DIM):
    ku, ki, kg = jax.random.split(key, 3)
    # nn.init.normal_(..., std=0.1)
    user_emb = 0.1 * jax.random.normal(ku, (num_users, latent_dim), jnp.float32)
    item_emb = 0.1 * jax.random.normal(ki, (num_items, latent_dim), jnp.float32)

    # Synthetic bipartite interactions R -> symmetric-normalized adjacency
    #   A = [[0, R], [R^T, 0]],  G = D^-1/2 A D^-1/2   (standard LightGCN graph)
    r = (jax.random.uniform(kg, (num_users, num_items)) < 0.05).astype(jnp.float32)
    n = num_users + num_items
    a = jnp.zeros((n, n), jnp.float32)
    a = a.at[:num_users, num_users:].set(r)
    a = a.at[num_users:, :num_users].set(r.T)
    deg = jnp.sum(a, axis=1)
    d_inv_sqrt = jnp.where(deg > 0, 1.0 / jnp.sqrt(jnp.maximum(deg, 1e-12)), 0.0)
    graph = a * d_inv_sqrt[:, None] * d_inv_sqrt[None, :]
    return graph, user_emb, item_emb


# ---------------------------------------------------------------------------
# Pure-JAX f32 reference for correctness check
# ---------------------------------------------------------------------------
def reference_forward(graph, user_emb, item_emb, users, items, num_users):
    all_emb = jnp.concatenate([user_emb, item_emb], axis=0)
    embs = [all_emb]
    cur = all_emb
    for _ in range(N_LAYERS):
        cur = graph @ cur
        embs.append(cur)
    light_out = jnp.mean(jnp.stack(embs, axis=1), axis=1)
    all_users, all_items = light_out[:num_users], light_out[num_users:]
    return jnp.sum(all_users[users] * all_items[items], axis=-1)


if __name__ == "__main__":
    num_users, num_items = 128, 128   # N = 256 -> fused small-N path
    batch = 8

    key = jax.random.PRNGKey(0)
    graph, user_emb, item_emb = build_params(key, num_users, num_items)
    # Hoisted one-time cast (model-setup time, NOT per forward call).
    graph_bf16 = graph.astype(jnp.bfloat16)

    ku, ki = jax.random.split(jax.random.PRNGKey(1))
    users = jax.random.randint(ku, (batch,), 0, num_users, dtype=jnp.int32)
    items = jax.random.randint(ki, (batch,), 0, num_items, dtype=jnp.int32)

    gamma = lightgcn_forward(graph_bf16, user_emb, item_emb, users, items,
                             num_users=num_users)
    gamma = jax.block_until_ready(gamma)

    ref = reference_forward(graph, user_emb, item_emb, users, items, num_users)
    assert gamma.shape == (batch,)
    # G / matmul inputs stream as bf16 (f32 accumulation) -> looser than f32 1e-5.
    assert jnp.allclose(gamma, ref, atol=2e-2, rtol=2e-2), (gamma, ref)

    # Also exercise the large-N tiled K-reduction kernel (the production path)
    # with a forced small tiling so the grid / accumulation / Buffered(3) /
    # resident-X machinery actually runs at this test size.
    n_big = 512
    kx, kg2 = jax.random.split(jax.random.PRNGKey(2))
    g_big = (jax.random.uniform(kg2, (n_big, n_big)) < 0.05).astype(jnp.float32)
    g_big = g_big / jnp.maximum(jnp.sum(g_big, axis=1, keepdims=True), 1.0)
    x_big = 0.1 * jax.random.normal(kx, (n_big, LATENT_DIM), jnp.float32)
    y_f32, y_bf16 = propagate_layer(g_big.astype(jnp.bfloat16),
                                    x_big.astype(jnp.bfloat16), tm=128, tk=128)
    y_f32 = jax.block_until_ready(y_f32)
    ref_big = g_big @ x_big
    assert jnp.allclose(y_f32, ref_big, atol=2e-2, rtol=2e-2)
    assert jnp.allclose(y_bf16.astype(jnp.float32), ref_big, atol=3e-2, rtol=3e-2)

    print("KERNEL_OK")
</pallas_src>

<mosaic_0001>
module attributes {stable_mosaic.version = 11 : i64} {
  func.func @_fused_propagate_kernel(%arg0: memref<256x256xbf16, #tpu.memory_space<vmem>>, %arg1: memref<256x64xf32, #tpu.memory_space<vmem>>, %arg2: memref<256x64xf32, #tpu.memory_space<vmem>>) attributes {dimension_semantics = [], scalar_prefetch = 0 : i64, scratch_operands = 0 : i64, tpu.core_type = #tpu.core_type<tc>} {
    %c0 = arith.constant 0 : index
    %c0_0 = arith.constant 0 : index
    %0 = vector.load %arg0[%c0, %c0_0] : memref<256x256xbf16, #tpu.memory_space<vmem>>, vector<256x256xbf16>
    %c0_1 = arith.constant 0 : index
    %c0_2 = arith.constant 0 : index
    %1 = vector.load %arg1[%c0_1, %c0_2] : memref<256x64xf32, #tpu.memory_space<vmem>>, vector<256x64xf32>
    %2 = arith.truncf %1 : vector<256x64xf32> to vector<256x64xbf16>
    %cst = arith.constant dense<0.000000e+00> : vector<256x64xf32>
    %3 = tpu.matmul %0, %2, %cst {dimension_numbers = #tpu.dot_dimension_numbers<[1], [0], [0], [1], [0, 0, 1, 1], [], []>} : vector<256x256xbf16>, vector<256x64xbf16>, vector<256x64xf32> -> vector<256x64xf32>
    %4 = arith.addf %1, %3 : vector<256x64xf32>
    %5 = arith.truncf %3 : vector<256x64xf32> to vector<256x64xbf16>
    %cst_3 = arith.constant dense<0.000000e+00> : vector<256x64xf32>
    %6 = tpu.matmul %0, %5, %cst_3 {dimension_numbers = #tpu.dot_dimension_numbers<[1], [0], [0], [1], [0, 0, 1, 1], [], []>} : vector<256x256xbf16>, vector<256x64xbf16>, vector<256x64xf32> -> vector<256x64xf32>
    %7 = arith.addf %4, %6 : vector<256x64xf32>
    %8 = arith.truncf %6 : vector<256x64xf32> to vector<256x64xbf16>
    %cst_4 = arith.constant dense<0.000000e+00> : vector<256x64xf32>
    %9 = tpu.matmul %0, %8, %cst_4 {dimension_numbers = #tpu.dot_dimension_numbers<[1], [0], [0], [1], [0, 0, 1, 1], [], []>} : vector<256x256xbf16>, vector<256x64xbf16>, vector<256x64xf32> -> vector<256x64xf32>
    %10 = arith.addf %7, %9 : vector<256x64xf32>
    %cst_5 = arith.constant 2.500000e-01 : f32
    %11 = vector.broadcast %cst_5 : f32 to vector<256x64xf32>
    %12 = arith.mulf %10, %11 : vector<256x64xf32>
    %c0_6 = arith.constant 0 : index
    %c0_7 = arith.constant 0 : index
    %13 = vector.load %arg2[%c0_6, %c0_7] : memref<256x64xf32, #tpu.memory_space<vmem>>, vector<256x64xf32>
    tpu.vector_store %arg2[%c0_6, %c0_7], %12 {strides = array<i32>} : memref<256x64xf32, #tpu.memory_space<vmem>>, vector<256x64xf32>,
    return
  }
}

</mosaic_0001>

<llo_original>
// kernel: lightgcn_forward.1
$region0: #{lightgcn_forward.1}
  #allocation0 [shape = 'u32[]', space=smem, size = 0x4, offset = 0x4, fixed_abs, tag = 'smem constant byte address 0x4 - core index']
  #allocation1 [shape = 'u32[72,128]{1,0:T(1,128)}', space=vmem, size = 0x9000, scoped, tag = 'internal scratch']
  %s0 = inlined_call_operand.vmem [shape: bf16[256,256], index: 0, kind: input, shape index: {}]
  %s1 = inlined_call_operand.vmem [shape: f32[256,64], index: 1, kind: input, shape index: {}]
  %s2 = inlined_call_operand.vmem [shape: f32[256,64], index: 2, kind: output, shape index: {}]
  %s3 = sld [smem:[#allocation0]]
  $region18: #{lightgcn_forward.1} parent=0
    _
  %s5 = ssub.s32 1, %s3
  %s6 = scalar_select 0, %s5, %s3
  // Predicated region
  $region2: #{lightgcn_forward.1} parent=0 // pred_check
    _
  $region3: #{lightgcn_forward.1} parent=0 // pred_check_branch
    %8 = sbr.rel (0) target = $region5
  $region4: #{lightgcn_forward.1} parent=0 // pred_region
    _
  $region5: #{lightgcn_forward.1} parent=0 // pred_fallthru
    _
  // Predicated region
  $region6: #{lightgcn_forward.1} parent=0 // pred_check
    _
  $region7: #{lightgcn_forward.1} parent=0 // pred_check_branch
    %10 = sbr.rel (0) target = $region9
  $region8: #{lightgcn_forward.1} parent=0 // pred_region
    _
  $region9: #{lightgcn_forward.1} parent=0 // pred_fallthru
    _
  %v11 = vld [vmem:[%s0] sm:$0xff]
  %v12 = vld [vmem:[%s0 + $0x8] sm:$0xff]
  %v13 = vld [vmem:[%s0 + $0x10] sm:$0xff]
  %v14 = vld [vmem:[%s0 + $0x18] sm:$0xff]
  %v15 = vld [vmem:[%s0 + $0x20] sm:$0xff]
  %v16 = vld [vmem:[%s0 + $0x28] sm:$0xff]
  %v17 = vld [vmem:[%s0 + $0x30] sm:$0xff]
  %v18 = vld [vmem:[%s0 + $0x38] sm:$0xff]
  %v19 = vld [vmem:[%s0 + $0x40] sm:$0xff]
  %v20 = vld [vmem:[%s0 + $0x48] sm:$0xff]
  %v21 = vld [vmem:[%s0 + $0x50] sm:$0xff]
  %v22 = vld [vmem:[%s0 + $0x58] sm:$0xff]
  %v23 = vld [vmem:[%s0 + $0x60] sm:$0xff]
  %v24 = vld [vmem:[%s0 + $0x68] sm:$0xff]
  %v25 = vld [vmem:[%s0 + $0x70] sm:$0xff]
  %v26 = vld [vmem:[%s0 + $0x78] sm:$0xff]
  %v27 = vld [vmem:[%s0 + $0x80] sm:$0xff]
  %v28 = vld [vmem:[%s0 + $0x88] sm:$0xff]
  %v29 = vld [vmem:[%s0 + $0x90] sm:$0xff]
  %v30 = vld [vmem:[%s0 + $0x98] sm:$0xff]
  %v31 = vld [vmem:[%s0 + $0xa0] sm:$0xff]
  %v32 = vld [vmem:[%s0 + $0xa8] sm:$0xff]
  %v33 = vld [vmem:[%s0 + $0xb0] sm:$0xff]
  %v34 = vld [vmem:[%s0 + $0xb8] sm:$0xff]
  %v35 = vld [vmem:[%s0 + $0xc0] sm:$0xff]
  %v36 = vld [vmem:[%s0 + $0xc8] sm:$0xff]
  %v37 = vld [vmem:[%s0 + $0xd0] sm:$0xff]
  %v38 = vld [vmem:[%s0 + $0xd8] sm:$0xff]
  %v39 = vld [vmem:[%s0 + $0xe0] sm:$0xff]
  %v40 = vld [vmem:[%s0 + $0xe8] sm:$0xff]
  %v41 = vld [vmem:[%s0 + $0xf0] sm:$0xff]
  %v42 = vld [vmem:[%s0 + $0xf8] sm:$0xff]
  %v43 = vld [vmem:[%s1] sm:$0xff]
  %v44 = vld [vmem:[%s1 + $0x8] sm:$0xff]
  %v45 = vld [vmem:[%s1 + $0x10] sm:$0xff]
  %v46 = vld [vmem:[%s1 + $0x18] sm:$0xff]
  %v47 = vld [vmem:[%s1 + $0x20] sm:$0xff]
  %v48 = vld [vmem:[%s1 + $0x28] sm:$0xff]
  %v49 = vld [vmem:[%s1 + $0x30] sm:$0xff]
  %v50 = vld [vmem:[%s1 + $0x38] sm:$0xff]
  %v51 = vld [vmem:[%s1 + $0x40] sm:$0xff]
  %v52 = vld [vmem:[%s1 + $0x48] sm:$0xff]
  %v53 = vld [vmem:[%s1 + $0x50] sm:$0xff]
  %v54 = vld [vmem:[%s1 + $0x58] sm:$0xff]
  %v55 = vld [vmem:[%s1 + $0x60] sm:$0xff]
  %v56 = vld [vmem:[%s1 + $0x68] sm:$0xff]
  %v57 = vld [vmem:[%s1 + $0x70] sm:$0xff]
  %v58 = vld [vmem:[%s1 + $0x78] sm:$0xff]
  %v59 = vld [vmem:[%s1 + $0x80] sm:$0xff]
  %v60 = vld [vmem:[%s1 + $0x88] sm:$0xff]
  %v61 = vld [vmem:[%s1 + $0x90] sm:$0xff]
  %v62 = vld [vmem:[%s1 + $0x98] sm:$0xff]
  %v63 = vld [vmem:[%s1 + $0xa0] sm:$0xff]
  %v64 = vld [vmem:[%s1 + $0xa8] sm:$0xff]
  %v65 = vld [vmem:[%s1 + $0xb0] sm:$0xff]
  %v66 = vld [vmem:[%s1 + $0xb8] sm:$0xff]
  %v67 = vld [vmem:[%s1 + $0xc0] sm:$0xff]
  %v68 = vld [vmem:[%s1 + $0xc8] sm:$0xff]
  %v69 = vld [vmem:[%s1 + $0xd0] sm:$0xff]
  %v70 = vld [vmem:[%s1 + $0xd8] sm:$0xff]
  %v71 = vld [vmem:[%s1 + $0xe0] sm:$0xff]
  %v72 = vld [vmem:[%s1 + $0xe8] sm:$0xff]
  %v73 = vld [vmem:[%s1 + $0xf0] sm:$0xff]
  %v74 = vld [vmem:[%s1 + $0xf8] sm:$0xff]
  %v75 = vpack.c.bf16 %v44, %v43
  %v76 = vpack.c.bf16 %v46, %v45
  %v77 = vpack.c.bf16 %v48, %v47
  %v78 = vpack.c.bf16 %v50, %v49
  %v79 = vpack.c.bf16 %v52, %v51
  %v80 = vpack.c.bf16 %v54, %v53
  %v81 = vpack.c.bf16 %v56, %v55
  %v82 = vpack.c.bf16 %v58, %v57
  %v83 = vpack.c.bf16 %v60, %v59
  %v84 = vpack.c.bf16 %v62, %v61
  %v85 = vpack.c.bf16 %v64, %v63
  %v86 = vpack.c.bf16 %v66, %v65
  %v87 = vpack.c.bf16 %v68, %v67
  %v88 = vpack.c.bf16 %v70, %v69
  %v89 = vpack.c.bf16 %v72, %v71
  %v90 = vpack.c.bf16 %v74, %v73
  %v123 = vunpack.c.l.b16 %v11
  %v124 = vunpack.c.h.b16 %v11
  %v125 = vunpack.c.l.b16 %v12
  %v126 = vunpack.c.h.b16 %v12
  %v127 = vunpack.c.l.b16 %v13
  %v128 = vunpack.c.h.b16 %v13
  %v129 = vunpack.c.l.b16 %v14
  %v130 = vunpack.c.h.b16 %v14
  %v131 = vunpack.c.l.b16 %v15
  %v132 = vunpack.c.h.b16 %v15
  %v133 = vunpack.c.l.b16 %v16
  %v134 = vunpack.c.h.b16 %v16
  %v135 = vunpack.c.l.b16 %v17
  %v136 = vunpack.c.h.b16 %v17
  %v137 = vunpack.c.l.b16 %v18
  %v138 = vunpack.c.h.b16 %v18
  %v139 = vunpack.c.l.b16 %v19
  %v140 = vunpack.c.h.b16 %v19
  %v141 = vunpack.c.l.b16 %v20
  %v142 = vunpack.c.h.b16 %v20
  %v143 = vunpack.c.l.b16 %v21
  %v144 = vunpack.c.h.b16 %v21
  %v145 = vunpack.c.l.b16 %v22
  %v146 = vunpack.c.h.b16 %v22
  %v147 = vunpack.c.l.b16 %v23
  %v148 = vunpack.c.h.b16 %v23
  %v149 = vunpack.c.l.b16 %v24
  %v150 = vunpack.c.h.b16 %v24
  %v151 = vunpack.c.l.b16 %v25
  %v152 = vunpack.c.h.b16 %v25
  %v153 = vunpack.c.l.b16 %v26
  %v154 = vunpack.c.h.b16 %v26
  %v155 = vunpack.c.l.b16 %v27
  %v156 = vunpack.c.h.b16 %v27
  %v157 = vunpack.c.l.b16 %v28
  %v158 = vunpack.c.h.b16 %v28
  %v159 = vunpack.c.l.b16 %v29
  %v160 = vunpack.c.h.b16 %v29
  %v161 = vunpack.c.l.b16 %v30
  %v162 = vunpack.c.h.b16 %v30
  %v163 = vunpack.c.l.b16 %v31
  %v164 = vunpack.c.h.b16 %v31
  %v165 = vunpack.c.l.b16 %v32
  %v166 = vunpack.c.h.b16 %v32
  %v167 = vunpack.c.l.b16 %v33
  %v168 = vunpack.c.h.b16 %v33
  %v169 = vunpack.c.l.b16 %v34
  %v170 = vunpack.c.h.b16 %v34
  %v171 = vunpack.c.l.b16 %v35
  %v172 = vunpack.c.h.b16 %v35
  %v173 = vunpack.c.l.b16 %v36
  %v174 = vunpack.c.h.b16 %v36
  %v175 = vunpack.c.l.b16 %v37
  %v176 = vunpack.c.h.b16 %v37
  %v177 = vunpack.c.l.b16 %v38
  %v178 = vunpack.c.h.b16 %v38
  %v179 = vunpack.c.l.b16 %v39
  %v180 = vunpack.c.h.b16 %v39
  %v181 = vunpack.c.l.b16 %v40
  %v182 = vunpack.c.h.b16 %v40
  %v183 = vunpack.c.l.b16 %v41
  %v184 = vunpack.c.h.b16 %v41
  %v185 = vunpack.c.l.b16 %v42
  %v186 = vunpack.c.h.b16 %v42
  %v187 = vpack.c.b16 %v125, %v123
  %v188 = vpack.c.b16 %v126, %v124
  %v189 = vpack.c.b16 %v129, %v127
  %v190 = vpack.c.b16 %v130, %v128
  %v191 = vpack.c.b16 %v133, %v131
  %v192 = vpack.c.b16 %v134, %v132
  %v193 = vpack.c.b16 %v137, %v135
  %v194 = vpack.c.b16 %v138, %v136
  %v195 = vpack.c.b16 %v141, %v139
  %v196 = vpack.c.b16 %v142, %v140
  %v197 = vpack.c.b16 %v145, %v143
  %v198 = vpack.c.b16 %v146, %v144
  %v199 = vpack.c.b16 %v149, %v147
  %v200 = vpack.c.b16 %v150, %v148
  %v201 = vpack.c.b16 %v153, %v151
  %v202 = vpack.c.b16 %v154, %v152
  %v203 = vpack.c.b16 %v157, %v155
  %v204 = vpack.c.b16 %v158, %v156
  %v205 = vpack.c.b16 %v161, %v159
  %v206 = vpack.c.b16 %v162, %v160
  %v207 = vpack.c.b16 %v165, %v163
  %v208 = vpack.c.b16 %v166, %v164
  %v209 = vpack.c.b16 %v169, %v167
  %v210 = vpack.c.b16 %v170, %v168
  %v211 = vpack.c.b16 %v173, %v171
  %v212 = vpack.c.b16 %v174, %v172
  %v213 = vpack.c.b16 %v177, %v175
  %v214 = vpack.c.b16 %v178, %v176
  %v215 = vpack.c.b16 %v181, %v179
  %v216 = vpack.c.b16 %v182, %v180
  %v217 = vpack.c.b16 %v185, %v183
  %v218 = vpack.c.b16 %v186, %v184
  %251 = vmatpush.bf16.msra.mxu0 %v82
  %252 = vmatpush.bf16.msra.mxu0 %v81
  %253 = vmatpush.bf16.msra.mxu0 %v80
  %254 = vmatpush.bf16.msra.mxu0 %v79
  %255 = vmatpush.bf16.msra.mxu0 %v78
  %256 = vmatpush.bf16.msra.mxu0 %v77
  %257 = vmatpush.bf16.msra.mxu0 %v76
  %258 = vmatpush.bf16.msra.mxu0 %v75
  %259 = vmatmul.bf16.gmra.mxu0 %v187
  %v260 = vpop.f32.mrf.mxu0
  %v261 = vadd.f32 0.0, %v260
  %v262 = vpop.f32.mrf.mxu0
  %v263 = vadd.f32 0.0, %v262
  %264 = vmatmul.bf16.gmra.mxu0 %v189
  %v265 = vpop.f32.mrf.mxu0
  %v266 = vadd.f32 0.0, %v265
  %v267 = vpop.f32.mrf.mxu0
  %v268 = vadd.f32 0.0, %v267
  %269 = vmatmul.bf16.gmra.mxu0 %v191
  %v270 = vpop.f32.mrf.mxu0
  %v271 = vadd.f32 0.0, %v270
  %v272 = vpop.f32.mrf.mxu0
  %v273 = vadd.f32 0.0, %v272
  %274 = vmatmul.bf16.gmra.mxu0 %v193
  %v275 = vpop.f32.mrf.mxu0
  %v276 = vadd.f32 0.0, %v275
  %v277 = vpop.f32.mrf.mxu0
  %v278 = vadd.f32 0.0, %v277
  %279 = vmatmul.bf16.gmra.mxu0 %v195
  %v280 = vpop.f32.mrf.mxu0
  %v281 = vadd.f32 0.0, %v280
  %v282 = vpop.f32.mrf.mxu0
  %v283 = vadd.f32 0.0, %v282
  %284 = vmatmul.bf16.gmra.mxu0 %v197
  %v285 = vpop.f32.mrf.mxu0
  %v286 = vadd.f32 0.0, %v285
  %v287 = vpop.f32.mrf.mxu0
  %v288 = vadd.f32 0.0, %v287
  %289 = vmatmul.bf16.gmra.mxu0 %v199
  %v290 = vpop.f32.mrf.mxu0
  %v291 = vadd.f32 0.0, %v290
  %v292 = vpop.f32.mrf.mxu0
  %v293 = vadd.f32 0.0, %v292
  %294 = vmatmul.bf16.gmra.mxu0 %v201
  %v295 = vpop.f32.mrf.mxu0
  %v296 = vadd.f32 0.0, %v295
  %v297 = vpop.f32.mrf.mxu0
  %v298 = vadd.f32 0.0, %v297
  %299 = vmatmul.bf16.gmra.mxu0 %v203
  %v300 = vpop.f32.mrf.mxu0
  %v301 = vadd.f32 0.0, %v300
  %v302 = vpop.f32.mrf.mxu0
  %v303 = vadd.f32 0.0, %v302
  %304 = vmatmul.bf16.gmra.mxu0 %v205
  %v305 = vpop.f32.mrf.mxu0
  %v306 = vadd.f32 0.0, %v305
  %v307 = vpop.f32.mrf.mxu0
  %v308 = vadd.f32 0.0, %v307
  %309 = vmatmul.bf16.gmra.mxu0 %v207
  %v310 = vpop.f32.mrf.mxu0
  %v311 = vadd.f32 0.0, %v310
  %v312 = vpop.f32.mrf.mxu0
  %v313 = vadd.f32 0.0, %v312
  %314 = vmatmul.bf16.gmra.mxu0 %v209
  %v315 = vpop.f32.mrf.mxu0
  %v316 = vadd.f32 0.0, %v315
  %v317 = vpop.f32.mrf.mxu0
  %v318 = vadd.f32 0.0, %v317
  %319 = vmatmul.bf16.gmra.mxu0 %v211
  %v320 = vpop.f32.mrf.mxu0
  %v321 = vadd.f32 0.0, %v320
  %v322 = vpop.f32.mrf.mxu0
  %v323 = vadd.f32 0.0, %v322
  %324 = vmatmul.bf16.gmra.mxu0 %v213
  %v325 = vpop.f32.mrf.mxu0
  %v326 = vadd.f32 0.0, %v325
  %v327 = vpop.f32.mrf.mxu0
  %v328 = vadd.f32 0.0, %v327
  %329 = vmatmul.bf16.gmra.mxu0 %v215
  %v330 = vpop.f32.mrf.mxu0
  %v331 = vadd.f32 0.0, %v330
  %v332 = vpop.f32.mrf.mxu0
  %v333 = vadd.f32 0.0, %v332
  %334 = vmatmul.bf16.gmra.mxu0 %v217
  %v335 = vpop.f32.mrf.mxu0
  %v336 = vadd.f32 0.0, %v335
  %v337 = vpop.f32.mrf.mxu0
  %v338 = vadd.f32 0.0, %v337
  %339 = vdwg.mxu0
  %340 = vmatpush.bf16.msra.mxu0 %v90
  %341 = vmatpush.bf16.msra.mxu0 %v89
  %342 = vmatpush.bf16.msra.mxu0 %v88
  %343 = vmatpush.bf16.msra.mxu0 %v87
  %344 = vmatpush.bf16.msra.mxu0 %v86
  %345 = vmatpush.bf16.msra.mxu0 %v85
  %346 = vmatpush.bf16.msra.mxu0 %v84
  %347 = vmatpush.bf16.msra.mxu0 %v83
  %348 = vmatmul.bf16.gmra.mxu0 %v188
  %v349 = vpop.f32.mrf.mxu0
  %v350 = vadd.f32 %v261, %v349
  %v351 = vpop.f32.mrf.mxu0
  %v352 = vadd.f32 %v263, %v351
  %353 = vmatmul.bf16.gmra.mxu0 %v190
  %v354 = vpop.f32.mrf.mxu0
  %v355 = vadd.f32 %v266, %v354
  %v356 = vpop.f32.mrf.mxu0
  %v357 = vadd.f32 %v268, %v356
  %358 = vmatmul.bf16.gmra.mxu0 %v192
  %v359 = vpop.f32.mrf.mxu0
  %v360 = vadd.f32 %v271, %v359
  %v361 = vpop.f32.mrf.mxu0
  %v362 = vadd.f32 %v273, %v361
  %363 = vmatmul.bf16.gmra.mxu0 %v194
  %v364 = vpop.f32.mrf.mxu0
  %v365 = vadd.f32 %v276, %v364
  %v366 = vpop.f32.mrf.mxu0
  %v367 = vadd.f32 %v278, %v366
  %368 = vmatmul.bf16.gmra.mxu0 %v196
  %v369 = vpop.f32.mrf.mxu0
  %v370 = vadd.f32 %v281, %v369
  %v371 = vpop.f32.mrf.mxu0
  %v372 = vadd.f32 %v283, %v371
  %373 = vmatmul.bf16.gmra.mxu0 %v198
  %v374 = vpop.f32.mrf.mxu0
  %v375 = vadd.f32 %v286, %v374
  %v376 = vpop.f32.mrf.mxu0
  %v377 = vadd.f32 %v288, %v376
  %378 = vmatmul.bf16.gmra.mxu0 %v200
  %v379 = vpop.f32.mrf.mxu0
  %v380 = vadd.f32 %v291, %v379
  %v381 = vpop.f32.mrf.mxu0
  %v382 = vadd.f32 %v293, %v381
  %383 = vmatmul.bf16.gmra.mxu0 %v202
  %v384 = vpop.f32.mrf.mxu0
  %v385 = vadd.f32 %v296, %v384
  %v386 = vpop.f32.mrf.mxu0
  %v387 = vadd.f32 %v298, %v386
  %388 = vmatmul.bf16.gmra.mxu0 %v204
  %v389 = vpop.f32.mrf.mxu0
  %v390 = vadd.f32 %v301, %v389
  %v391 = vpop.f32.mrf.mxu0
  %v392 = vadd.f32 %v303, %v391
  %393 = vmatmul.bf16.gmra.mxu0 %v206
  %v394 = vpop.f32.mrf.mxu0
  %v395 = vadd.f32 %v306, %v394
  %v396 = vpop.f32.mrf.mxu0
  %v397 = vadd.f32 %v308, %v396
  %398 = vmatmul.bf16.gmra.mxu0 %v208
  %v399 = vpop.f32.mrf.mxu0
  %v400 = vadd.f32 %v311, %v399
  %v401 = vpop.f32.mrf.mxu0
  %v402 = vadd.f32 %v313, %v401
  %403 = vmatmul.bf16.gmra.mxu0 %v210
  %v404 = vpop.f32.mrf.mxu0
  %v405 = vadd.f32 %v316, %v404
  %v406 = vpop.f32.mrf.mxu0
  %v407 = vadd.f32 %v318, %v406
  %408 = vmatmul.bf16.gmra.mxu0 %v212
  %v409 = vpop.f32.mrf.mxu0
  %v410 = vadd.f32 %v321, %v409
  %v411 = vpop.f32.mrf.mxu0
  %v412 = vadd.f32 %v323, %v411
  %413 = vmatmul.bf16.gmra.mxu0 %v214
  %v414 = vpop.f32.mrf.mxu0
  %v415 = vadd.f32 %v326, %v414
  %v416 = vpop.f32.mrf.mxu0
  %v417 = vadd.f32 %v328, %v416
  %418 = vmatmul.bf16.gmra.mxu0 %v216
  %v419 = vpop.f32.mrf.mxu0
  %v420 = vadd.f32 %v331, %v419
  %v421 = vpop.f32.mrf.mxu0
  %v422 = vadd.f32 %v333, %v421
  %423 = vmatmul.bf16.gmra.mxu0 %v218
  %v424 = vpop.f32.mrf.mxu0
  %v425 = vadd.f32 %v336, %v424
  %v426 = vpop.f32.mrf.mxu0
  %v427 = vadd.f32 %v338, %v426
  %428 = vdwg.mxu0
  %v429 = vadd.f32 %v43, %v350
  %v430 = vadd.f32 %v44, %v352
  %v431 = vadd.f32 %v45, %v355
  %v432 = vadd.f32 %v46, %v357
  %v433 = vadd.f32 %v47, %v360
  %v434 = vadd.f32 %v48, %v362
  %v435 = vadd.f32 %v49, %v365
  %v436 = vadd.f32 %v50, %v367
  %v437 = vadd.f32 %v51, %v370
  %v438 = vadd.f32 %v52, %v372
  %v439 = vadd.f32 %v53, %v375
  %v440 = vadd.f32 %v54, %v377
  %v441 = vadd.f32 %v55, %v380
  %v442 = vadd.f32 %v56, %v382
  %v443 = vadd.f32 %v57, %v385
  %v444 = vadd.f32 %v58, %v387
  %v445 = vadd.f32 %v59, %v390
  %v446 = vadd.f32 %v60, %v392
  %v447 = vadd.f32 %v61, %v395
  %v448 = vadd.f32 %v62, %v397
  %v449 = vadd.f32 %v63, %v400
  %v450 = vadd.f32 %v64, %v402
  %v451 = vadd.f32 %v65, %v405
  %v452 = vadd.f32 %v66, %v407
  %v453 = vadd.f32 %v67, %v410
  %v454 = vadd.f32 %v68, %v412
  %v455 = vadd.f32 %v69, %v415
  %v456 = vadd.f32 %v70, %v417
  %v457 = vadd.f32 %v71, %v420
  %v458 = vadd.f32 %v72, %v422
  %v459 = vadd.f32 %v73, %v425
  %v460 = vadd.f32 %v74, %v427
  %v461 = vpack.c.bf16 %v352, %v350
  %v462 = vpack.c.bf16 %v357, %v355
  %v463 = vpack.c.bf16 %v362, %v360
  %v464 = vpack.c.bf16 %v367, %v365
  %v465 = vpack.c.bf16 %v372, %v370
  %v466 = vpack.c.bf16 %v377, %v375
  %v467 = vpack.c.bf16 %v382, %v380
  %v468 = vpack.c.bf16 %v387, %v385
  %v469 = vpack.c.bf16 %v392, %v390
  %v470 = vpack.c.bf16 %v397, %v395
  %v471 = vpack.c.bf16 %v402, %v400
  %v472 = vpack.c.bf16 %v407, %v405
  %v473 = vpack.c.bf16 %v412, %v410
  %v474 = vpack.c.bf16 %v417, %v415
  %v475 = vpack.c.bf16 %v422, %v420
  %v476 = vpack.c.bf16 %v427, %v425
  %477 = vmatpush.bf16.msra.mxu0 %v468
  %478 = vmatpush.bf16.msra.mxu0 %v467
  %479 = vmatpush.bf16.msra.mxu0 %v466
  %480 = vmatpush.bf16.msra.mxu0 %v465
  %481 = vmatpush.bf16.msra.mxu0 %v464
  %482 = vmatpush.bf16.msra.mxu0 %v463
  %483 = vmatpush.bf16.msra.mxu0 %v462
  %484 = vmatpush.bf16.msra.mxu0 %v461
  %485 = vmatmul.bf16.gmra.mxu0 %v187
  %v486 = vpop.f32.mrf.mxu0
  %v487 = vadd.f32 0.0, %v486
  %v488 = vpop.f32.mrf.mxu0
  %v489 = vadd.f32 0.0, %v488
  %490 = vmatmul.bf16.gmra.mxu0 %v189
  %v491 = vpop.f32.mrf.mxu0
  %v492 = vadd.f32 0.0, %v491
  %v493 = vpop.f32.mrf.mxu0
  %v494 = vadd.f32 0.0, %v493
  %495 = vmatmul.bf16.gmra.mxu0 %v191
  %v496 = vpop.f32.mrf.mxu0
  %v497 = vadd.f32 0.0, %v496
  %v498 = vpop.f32.mrf.mxu0
  %v499 = vadd.f32 0.0, %v498
  %500 = vmatmul.bf16.gmra.mxu0 %v193
  %v501 = vpop.f32.mrf.mxu0
  %v502 = vadd.f32 0.0, %v501
  %v503 = vpop.f32.mrf.mxu0
  %v504 = vadd.f32 0.0, %v503
  %505 = vmatmul.bf16.gmra.mxu0 %v195
  %v506 = vpop.f32.mrf.mxu0
  %v507 = vadd.f32 0.0, %v506
  %v508 = vpop.f32.mrf.mxu0
  %v509 = vadd.f32 0.0, %v508
  %510 = vmatmul.bf16.gmra.mxu0 %v197
  %v511 = vpop.f32.mrf.mxu0
  %v512 = vadd.f32 0.0, %v511
  %v513 = vpop.f32.mrf.mxu0
  %v514 = vadd.f32 0.0, %v513
  %515 = vmatmul.bf16.gmra.mxu0 %v199
  %v516 = vpop.f32.mrf.mxu0
  %v517 = vadd.f32 0.0, %v516
  %v518 = vpop.f32.mrf.mxu0
  %v519 = vadd.f32 0.0, %v518
  %520 = vmatmul.bf16.gmra.mxu0 %v201
  %v521 = vpop.f32.mrf.mxu0
  %v522 = vadd.f32 0.0, %v521
  %v523 = vpop.f32.mrf.mxu0
  %v524 = vadd.f32 0.0, %v523
  %525 = vmatmul.bf16.gmra.mxu0 %v203
  %v526 = vpop.f32.mrf.mxu0
  %v527 = vadd.f32 0.0, %v526
  %v528 = vpop.f32.mrf.mxu0
  %v529 = vadd.f32 0.0, %v528
  %530 = vmatmul.bf16.gmra.mxu0 %v205
  %v531 = vpop.f32.mrf.mxu0
  %v532 = vadd.f32 0.0, %v531
  %v533 = vpop.f32.mrf.mxu0
  %v534 = vadd.f32 0.0, %v533
  %535 = vmatmul.bf16.gmra.mxu0 %v207
  %v536 = vpop.f32.mrf.mxu0
  %v537 = vadd.f32 0.0, %v536
  %v538 = vpop.f32.mrf.mxu0
  %v539 = vadd.f32 0.0, %v538
  %540 = vmatmul.bf16.gmra.mxu0 %v209
  %v541 = vpop.f32.mrf.mxu0
  %v542 = vadd.f32 0.0, %v541
  %v543 = vpop.f32.mrf.mxu0
  %v544 = vadd.f32 0.0, %v543
  %545 = vmatmul.bf16.gmra.mxu0 %v211
  %v546 = vpop.f32.mrf.mxu0
  %v547 = vadd.f32 0.0, %v546
  %v548 = vpop.f32.mrf.mxu0
  %v549 = vadd.f32 0.0, %v548
  %550 = vmatmul.bf16.gmra.mxu0 %v213
  %v551 = vpop.f32.mrf.mxu0
  %v552 = vadd.f32 0.0, %v551
  %v553 = vpop.f32.mrf.mxu0
  %v554 = vadd.f32 0.0, %v553
  %555 = vmatmul.bf16.gmra.mxu0 %v215
  %v556 = vpop.f32.mrf.mxu0
  %v557 = vadd.f32 0.0, %v556
  %v558 = vpop.f32.mrf.mxu0
  %v559 = vadd.f32 0.0, %v558
  %560 = vmatmul.bf16.gmra.mxu0 %v217
  %v561 = vpop.f32.mrf.mxu0
  %v562 = vadd.f32 0.0, %v561
  %v563 = vpop.f32.mrf.mxu0
  %v564 = vadd.f32 0.0, %v563
  %565 = vdwg.mxu0
  %566 = vmatpush.bf16.msra.mxu0 %v476
  %567 = vmatpush.bf16.msra.mxu0 %v475
  %568 = vmatpush.bf16.msra.mxu0 %v474
  %569 = vmatpush.bf16.msra.mxu0 %v473
  %570 = vmatpush.bf16.msra.mxu0 %v472
  %571 = vmatpush.bf16.msra.mxu0 %v471
  %572 = vmatpush.bf16.msra.mxu0 %v470
  %573 = vmatpush.bf16.msra.mxu0 %v469
  %574 = vmatmul.bf16.gmra.mxu0 %v188
  %v575 = vpop.f32.mrf.mxu0
  %v576 = vadd.f32 %v487, %v575
  %v577 = vpop.f32.mrf.mxu0
  %v578 = vadd.f32 %v489, %v577
  %579 = vmatmul.bf16.gmra.mxu0 %v190
  %v580 = vpop.f32.mrf.mxu0
  %v581 = vadd.f32 %v492, %v580
  %v582 = vpop.f32.mrf.mxu0
  %v583 = vadd.f32 %v494, %v582
  %584 = vmatmul.bf16.gmra.mxu0 %v192
  %v585 = vpop.f32.mrf.mxu0
  %v586 = vadd.f32 %v497, %v585
  %v587 = vpop.f32.mrf.mxu0
  %v588 = vadd.f32 %v499, %v587
  %589 = vmatmul.bf16.gmra.mxu0 %v194
  %v590 = vpop.f32.mrf.mxu0
  %v591 = vadd.f32 %v502, %v590
  %v592 = vpop.f32.mrf.mxu0
  %v593 = vadd.f32 %v504, %v592
  %594 = vmatmul.bf16.gmra.mxu0 %v196
  %v595 = vpop.f32.mrf.mxu0
  %v596 = vadd.f32 %v507, %v595
  %v597 = vpop.f32.mrf.mxu0
  %v598 = vadd.f32 %v509, %v597
  %599 = vmatmul.bf16.gmra.mxu0 %v198
  %v600 = vpop.f32.mrf.mxu0
  %v601 = vadd.f32 %v512, %v600
  %v602 = vpop.f32.mrf.mxu0
  %v603 = vadd.f32 %v514, %v602
  %604 = vmatmul.bf16.gmra.mxu0 %v200
  %v605 = vpop.f32.mrf.mxu0
  %v606 = vadd.f32 %v517, %v605
  %v607 = vpop.f32.mrf.mxu0
  %v608 = vadd.f32 %v519, %v607
  %609 = vmatmul.bf16.gmra.mxu0 %v202
  %v610 = vpop.f32.mrf.mxu0
  %v611 = vadd.f32 %v522, %v610
  %v612 = vpop.f32.mrf.mxu0
  %v613 = vadd.f32 %v524, %v612
  %614 = vmatmul.bf16.gmra.mxu0 %v204
  %v615 = vpop.f32.mrf.mxu0
  %v616 = vadd.f32 %v527, %v615
  %v617 = vpop.f32.mrf.mxu0
  %v618 = vadd.f32 %v529, %v617
  %619 = vmatmul.bf16.gmra.mxu0 %v206
  %v620 = vpop.f32.mrf.mxu0
  %v621 = vadd.f32 %v532, %v620
  %v622 = vpop.f32.mrf.mxu0
  %v623 = vadd.f32 %v534, %v622
  %624 = vmatmul.bf16.gmra.mxu0 %v208
  %v625 = vpop.f32.mrf.mxu0
  %v626 = vadd.f32 %v537, %v625
  %v627 = vpop.f32.mrf.mxu0
  %v628 = vadd.f32 %v539, %v627
  %629 = vmatmul.bf16.gmra.mxu0 %v210
  %v630 = vpop.f32.mrf.mxu0
  %v631 = vadd.f32 %v542, %v630
  %v632 = vpop.f32.mrf.mxu0
  %v633 = vadd.f32 %v544, %v632
  %634 = vmatmul.bf16.gmra.mxu0 %v212
  %v635 = vpop.f32.mrf.mxu0
  %v636 = vadd.f32 %v547, %v635
  %v637 = vpop.f32.mrf.mxu0
  %v638 = vadd.f32 %v549, %v637
  %639 = vmatmul.bf16.gmra.mxu0 %v214
  %v640 = vpop.f32.mrf.mxu0
  %v641 = vadd.f32 %v552, %v640
  %v642 = vpop.f32.mrf.mxu0
  %v643 = vadd.f32 %v554, %v642
  %644 = vmatmul.bf16.gmra.mxu0 %v216
  %v645 = vpop.f32.mrf.mxu0
  %v646 = vadd.f32 %v557, %v645
  %v647 = vpop.f32.mrf.mxu0
  %v648 = vadd.f32 %v559, %v647
  %649 = vmatmul.bf16.gmra.mxu0 %v218
  %v650 = vpop.f32.mrf.mxu0
  %v651 = vadd.f32 %v562, %v650
  %v652 = vpop.f32.mrf.mxu0
  %v653 = vadd.f32 %v564, %v652
  %654 = vdwg.mxu0
  %v655 = vadd.f32 %v429, %v576
  %v656 = vadd.f32 %v430, %v578
  %v657 = vadd.f32 %v431, %v581
  %v658 = vadd.f32 %v432, %v583
  %v659 = vadd.f32 %v433, %v586
  %v660 = vadd.f32 %v434, %v588
  %v661 = vadd.f32 %v435, %v591
  %v662 = vadd.f32 %v436, %v593
  %v663 = vadd.f32 %v437, %v596
  %v664 = vadd.f32 %v438, %v598
  %v665 = vadd.f32 %v439, %v601
  %v666 = vadd.f32 %v440, %v603
  %v667 = vadd.f32 %v441, %v606
  %v668 = vadd.f32 %v442, %v608
  %v669 = vadd.f32 %v443, %v611
  %v670 = vadd.f32 %v444, %v613
  %v671 = vadd.f32 %v445, %v616
  %v672 = vadd.f32 %v446, %v618
  %v673 = vadd.f32 %v447, %v621
  %v674 = vadd.f32 %v448, %v623
  %v675 = vadd.f32 %v449, %v626
  %v676 = vadd.f32 %v450, %v628
  %v677 = vadd.f32 %v451, %v631
  %v678 = vadd.f32 %v452, %v633
  %v679 = vadd.f32 %v453, %v636
  %v680 = vadd.f32 %v454, %v638
  %v681 = vadd.f32 %v455, %v641
  %v682 = vadd.f32 %v456, %v643
  %v683 = vadd.f32 %v457, %v646
  %v684 = vadd.f32 %v458, %v648
  %v685 = vadd.f32 %v459, %v651
  %v686 = vadd.f32 %v460, %v653
  %v687 = vpack.c.bf16 %v578, %v576
  %v688 = vpack.c.bf16 %v583, %v581
  %v689 = vpack.c.bf16 %v588, %v586
  %v690 = vpack.c.bf16 %v593, %v591
  %v691 = vpack.c.bf16 %v598, %v596
  %v692 = vpack.c.bf16 %v603, %v601
  %v693 = vpack.c.bf16 %v608, %v606
  %v694 = vpack.c.bf16 %v613, %v611
  %v695 = vpack.c.bf16 %v618, %v616
  %v696 = vpack.c.bf16 %v623, %v621
  %v697 = vpack.c.bf16 %v628, %v626
  %v698 = vpack.c.bf16 %v633, %v631
  %v699 = vpack.c.bf16 %v638, %v636
  %v700 = vpack.c.bf16 %v643, %v641
  %v701 = vpack.c.bf16 %v648, %v646
  %v702 = vpack.c.bf16 %v653, %v651
  %703 = vmatpush.bf16.msra.mxu0 %v694
  %704 = vmatpush.bf16.msra.mxu0 %v693
  %705 = vmatpush.bf16.msra.mxu0 %v692
  %706 = vmatpush.bf16.msra.mxu0 %v691
  %707 = vmatpush.bf16.msra.mxu0 %v690
  %708 = vmatpush.bf16.msra.mxu0 %v689
  %709 = vmatpush.bf16.msra.mxu0 %v688
  %710 = vmatpush.bf16.msra.mxu0 %v687
  %711 = vmatmul.bf16.gmra.mxu0 %v187
  %v712 = vpop.f32.mrf.mxu0
  %v713 = vadd.f32 0.0, %v712
  %v714 = vpop.f32.mrf.mxu0
  %v715 = vadd.f32 0.0, %v714
  %716 = vmatmul.bf16.gmra.mxu0 %v189
  %v717 = vpop.f32.mrf.mxu0
  %v718 = vadd.f32 0.0, %v717
  %v719 = vpop.f32.mrf.mxu0
  %v720 = vadd.f32 0.0, %v719
  %721 = vmatmul.bf16.gmra.mxu0 %v191
  %v722 = vpop.f32.mrf.mxu0
  %v723 = vadd.f32 0.0, %v722
  %v724 = vpop.f32.mrf.mxu0
  %v725 = vadd.f32 0.0, %v724
  %726 = vmatmul.bf16.gmra.mxu0 %v193
  %v727 = vpop.f32.mrf.mxu0
  %v728 = vadd.f32 0.0, %v727
  %v729 = vpop.f32.mrf.mxu0
  %v730 = vadd.f32 0.0, %v729
  %731 = vmatmul.bf16.gmra.mxu0 %v195
  %v732 = vpop.f32.mrf.mxu0
  %v733 = vadd.f32 0.0, %v732
  %v734 = vpop.f32.mrf.mxu0
  %v735 = vadd.f32 0.0, %v734
  %736 = vmatmul.bf16.gmra.mxu0 %v197
  %v737 = vpop.f32.mrf.mxu0
  %v738 = vadd.f32 0.0, %v737
  %v739 = vpop.f32.mrf.mxu0
  %v740 = vadd.f32 0.0, %v739
  %741 = vmatmul.bf16.gmra.mxu0 %v199
  %v742 = vpop.f32.mrf.mxu0
  %v743 = vadd.f32 0.0, %v742
  %v744 = vpop.f32.mrf.mxu0
  %v745 = vadd.f32 0.0, %v744
  %746 = vmatmul.bf16.gmra.mxu0 %v201
  %v747 = vpop.f32.mrf.mxu0
  %v748 = vadd.f32 0.0, %v747
  %v749 = vpop.f32.mrf.mxu0
  %v750 = vadd.f32 0.0, %v749
  %751 = vmatmul.bf16.gmra.mxu0 %v203
  %v752 = vpop.f32.mrf.mxu0
  %v753 = vadd.f32 0.0, %v752
  %v754 = vpop.f32.mrf.mxu0
  %v755 = vadd.f32 0.0, %v754
  %756 = vmatmul.bf16.gmra.mxu0 %v205
  %v757 = vpop.f32.mrf.mxu0
  %v758 = vadd.f32 0.0, %v757
  %v759 = vpop.f32.mrf.mxu0
  %v760 = vadd.f32 0.0, %v759
  %761 = vmatmul.bf16.gmra.mxu0 %v207
  %v762 = vpop.f32.mrf.mxu0
  %v763 = vadd.f32 0.0, %v762
  %v764 = vpop.f32.mrf.mxu0
  %v765 = vadd.f32 0.0, %v764
  %766 = vmatmul.bf16.gmra.mxu0 %v209
  %v767 = vpop.f32.mrf.mxu0
  %v768 = vadd.f32 0.0, %v767
  %v769 = vpop.f32.mrf.mxu0
  %v770 = vadd.f32 0.0, %v769
  %771 = vmatmul.bf16.gmra.mxu0 %v211
  %v772 = vpop.f32.mrf.mxu0
  %v773 = vadd.f32 0.0, %v772
  %v774 = vpop.f32.mrf.mxu0
  %v775 = vadd.f32 0.0, %v774
  %776 = vmatmul.bf16.gmra.mxu0 %v213
  %v777 = vpop.f32.mrf.mxu0
  %v778 = vadd.f32 0.0, %v777
  %v779 = vpop.f32.mrf.mxu0
  %v780 = vadd.f32 0.0, %v779
  %781 = vmatmul.bf16.gmra.mxu0 %v215
  %v782 = vpop.f32.mrf.mxu0
  %v783 = vadd.f32 0.0, %v782
  %v784 = vpop.f32.mrf.mxu0
  %v785 = vadd.f32 0.0, %v784
  %786 = vmatmul.bf16.gmra.mxu0 %v217
  %v787 = vpop.f32.mrf.mxu0
  %v788 = vadd.f32 0.0, %v787
  %v789 = vpop.f32.mrf.mxu0
  %v790 = vadd.f32 0.0, %v789
  %791 = vdwg.mxu0
  %792 = vmatpush.bf16.msra.mxu0 %v702
  %793 = vmatpush.bf16.msra.mxu0 %v701
  %794 = vmatpush.bf16.msra.mxu0 %v700
  %795 = vmatpush.bf16.msra.mxu0 %v699
  %796 = vmatpush.bf16.msra.mxu0 %v698
  %797 = vmatpush.bf16.msra.mxu0 %v697
  %798 = vmatpush.bf16.msra.mxu0 %v696
  %799 = vmatpush.bf16.msra.mxu0 %v695
  %800 = vmatmul.bf16.gmra.mxu0 %v188
  %v801 = vpop.f32.mrf.mxu0
  %v802 = vadd.f32 %v713, %v801
  %v803 = vpop.f32.mrf.mxu0
  %v804 = vadd.f32 %v715, %v803
  %805 = vmatmul.bf16.gmra.mxu0 %v190
  %v806 = vpop.f32.mrf.mxu0
  %v807 = vadd.f32 %v718, %v806
  %v808 = vpop.f32.mrf.mxu0
  %v809 = vadd.f32 %v720, %v808
  %810 = vmatmul.bf16.gmra.mxu0 %v192
  %v811 = vpop.f32.mrf.mxu0
  %v812 = vadd.f32 %v723, %v811
  %v813 = vpop.f32.mrf.mxu0
  %v814 = vadd.f32 %v725, %v813
  %815 = vmatmul.bf16.gmra.mxu0 %v194
  %v816 = vpop.f32.mrf.mxu0
  %v817 = vadd.f32 %v728, %v816
  %v818 = vpop.f32.mrf.mxu0
  %v819 = vadd.f32 %v730, %v818
  %820 = vmatmul.bf16.gmra.mxu0 %v196
  %v821 = vpop.f32.mrf.mxu0
  %v822 = vadd.f32 %v733, %v821
  %v823 = vpop.f32.mrf.mxu0
  %v824 = vadd.f32 %v735, %v823
  %825 = vmatmul.bf16.gmra.mxu0 %v198
  %v826 = vpop.f32.mrf.mxu0
  %v827 = vadd.f32 %v738, %v826
  %v828 = vpop.f32.mrf.mxu0
  %v829 = vadd.f32 %v740, %v828
  %830 = vmatmul.bf16.gmra.mxu0 %v200
  %v831 = vpop.f32.mrf.mxu0
  %v832 = vadd.f32 %v743, %v831
  %v833 = vpop.f32.mrf.mxu0
  %v834 = vadd.f32 %v745, %v833
  %835 = vmatmul.bf16.gmra.mxu0 %v202
  %v836 = vpop.f32.mrf.mxu0
  %v837 = vadd.f32 %v748, %v836
  %v838 = vpop.f32.mrf.mxu0
  %v839 = vadd.f32 %v750, %v838
  %840 = vmatmul.bf16.gmra.mxu0 %v204
  %v841 = vpop.f32.mrf.mxu0
  %v842 = vadd.f32 %v753, %v841
  %v843 = vpop.f32.mrf.mxu0
  %v844 = vadd.f32 %v755, %v843
  %845 = vmatmul.bf16.gmra.mxu0 %v206
  %v846 = vpop.f32.mrf.mxu0
  %v847 = vadd.f32 %v758, %v846
  %v848 = vpop.f32.mrf.mxu0
  %v849 = vadd.f32 %v760, %v848
  %850 = vmatmul.bf16.gmra.mxu0 %v208
  %v851 = vpop.f32.mrf.mxu0
  %v852 = vadd.f32 %v763, %v851
  %v853 = vpop.f32.mrf.mxu0
  %v854 = vadd.f32 %v765, %v853
  %855 = vmatmul.bf16.gmra.mxu0 %v210
  %v856 = vpop.f32.mrf.mxu0
  %v857 = vadd.f32 %v768, %v856
  %v858 = vpop.f32.mrf.mxu0
  %v859 = vadd.f32 %v770, %v858
  %860 = vmatmul.bf16.gmra.mxu0 %v212
  %v861 = vpop.f32.mrf.mxu0
  %v862 = vadd.f32 %v773, %v861
  %v863 = vpop.f32.mrf.mxu0
  %v864 = vadd.f32 %v775, %v863
  %865 = vmatmul.bf16.gmra.mxu0 %v214
  %v866 = vpop.f32.mrf.mxu0
  %v867 = vadd.f32 %v778, %v866
  %v868 = vpop.f32.mrf.mxu0
  %v869 = vadd.f32 %v780, %v868
  %870 = vmatmul.bf16.gmra.mxu0 %v216
  %v871 = vpop.f32.mrf.mxu0
  %v872 = vadd.f32 %v783, %v871
  %v873 = vpop.f32.mrf.mxu0
  %v874 = vadd.f32 %v785, %v873
  %875 = vmatmul.bf16.gmra.mxu0 %v218
  %v876 = vpop.f32.mrf.mxu0
  %v877 = vadd.f32 %v788, %v876
  %v878 = vpop.f32.mrf.mxu0
  %v879 = vadd.f32 %v790, %v878
  %880 = vdwg.mxu0
  %v881 = vadd.f32 %v655, %v802
  %v882 = vadd.f32 %v656, %v804
  %v883 = vadd.f32 %v657, %v807
  %v884 = vadd.f32 %v658, %v809
  %v885 = vadd.f32 %v659, %v812
  %v886 = vadd.f32 %v660, %v814
  %v887 = vadd.f32 %v661, %v817
  %v888 = vadd.f32 %v662, %v819
  %v889 = vadd.f32 %v663, %v822
  %v890 = vadd.f32 %v664, %v824
  %v891 = vadd.f32 %v665, %v827
  %v892 = vadd.f32 %v666, %v829
  %v893 = vadd.f32 %v667, %v832
  %v894 = vadd.f32 %v668, %v834
  %v895 = vadd.f32 %v669, %v837
  %v896 = vadd.f32 %v670, %v839
  %v897 = vadd.f32 %v671, %v842
  %v898 = vadd.f32 %v672, %v844
  %v899 = vadd.f32 %v673, %v847
  %v900 = vadd.f32 %v674, %v849
  %v901 = vadd.f32 %v675, %v852
  %v902 = vadd.f32 %v676, %v854
  %v903 = vadd.f32 %v677, %v857
  %v904 = vadd.f32 %v678, %v859
  %v905 = vadd.f32 %v679, %v862
  %v906 = vadd.f32 %v680, %v864
  %v907 = vadd.f32 %v681, %v867
  %v908 = vadd.f32 %v682, %v869
  %v909 = vadd.f32 %v683, %v872
  %v910 = vadd.f32 %v684, %v874
  %v911 = vadd.f32 %v685, %v877
  %v912 = vadd.f32 %v686, %v879
  %v913 = vmul.f32 %v881, 0.25
  %v914 = vmul.f32 %v882, 0.25
  %v915 = vmul.f32 %v883, 0.25
  %v916 = vmul.f32 %v884, 0.25
  %v917 = vmul.f32 %v885, 0.25
  %v918 = vmul.f32 %v886, 0.25
  %v919 = vmul.f32 %v887, 0.25
  %v920 = vmul.f32 %v888, 0.25
  %v921 = vmul.f32 %v889, 0.25
  %v922 = vmul.f32 %v890, 0.25
  %v923 = vmul.f32 %v891, 0.25
  %v924 = vmul.f32 %v892, 0.25
  %v925 = vmul.f32 %v893, 0.25
  %v926 = vmul.f32 %v894, 0.25
  %v927 = vmul.f32 %v895, 0.25
  %v928 = vmul.f32 %v896, 0.25
  %v929 = vmul.f32 %v897, 0.25
  %v930 = vmul.f32 %v898, 0.25
  %v931 = vmul.f32 %v899, 0.25
  %v932 = vmul.f32 %v900, 0.25
  %v933 = vmul.f32 %v901, 0.25
  %v934 = vmul.f32 %v902, 0.25
  %v935 = vmul.f32 %v903, 0.25
  %v936 = vmul.f32 %v904, 0.25
  %v937 = vmul.f32 %v905, 0.25
  %v938 = vmul.f32 %v906, 0.25
  %v939 = vmul.f32 %v907, 0.25
  %v940 = vmul.f32 %v908, 0.25
  %v941 = vmul.f32 %v909, 0.25
  %v942 = vmul.f32 %v910, 0.25
  %v943 = vmul.f32 %v911, 0.25
  %v944 = vmul.f32 %v912, 0.25
  %vm945 = vcmask 523264
  %946 = vst.msk [vmem:[%s2] sm:$0xff] %vm945, %v913
  %947 = vst.msk [vmem:[%s2 + $0x8] sm:$0xff] %vm945, %v914
  %948 = vst.msk [vmem:[%s2 + $0x10] sm:$0xff] %vm945, %v915
  %949 = vst.msk [vmem:[%s2 + $0x18] sm:$0xff] %vm945, %v916
  %950 = vst.msk [vmem:[%s2 + $0x20] sm:$0xff] %vm945, %v917
  %951 = vst.msk [vmem:[%s2 + $0x28] sm:$0xff] %vm945, %v918
  %952 = vst.msk [vmem:[%s2 + $0x30] sm:$0xff] %vm945, %v919
  %953 = vst.msk [vmem:[%s2 + $0x38] sm:$0xff] %vm945, %v920
  %954 = vst.msk [vmem:[%s2 + $0x40] sm:$0xff] %vm945, %v921
  %955 = vst.msk [vmem:[%s2 + $0x48] sm:$0xff] %vm945, %v922
  %956 = vst.msk [vmem:[%s2 + $0x50] sm:$0xff] %vm945, %v923
  %957 = vst.msk [vmem:[%s2 + $0x58] sm:$0xff] %vm945, %v924
  %958 = vst.msk [vmem:[%s2 + $0x60] sm:$0xff] %vm945, %v925
  %959 = vst.msk [vmem:[%s2 + $0x68] sm:$0xff] %vm945, %v926
  %960 = vst.msk [vmem:[%s2 + $0x70] sm:$0xff] %vm945, %v927
  %961 = vst.msk [vmem:[%s2 + $0x78] sm:$0xff] %vm945, %v928
  %962 = vst.msk [vmem:[%s2 + $0x80] sm:$0xff] %vm945, %v929
  %963 = vst.msk [vmem:[%s2 + $0x88] sm:$0xff] %vm945, %v930
  %964 = vst.msk [vmem:[%s2 + $0x90] sm:$0xff] %vm945, %v931
  %965 = vst.msk [vmem:[%s2 + $0x98] sm:$0xff] %vm945, %v932
  %966 = vst.msk [vmem:[%s2 + $0xa0] sm:$0xff] %vm945, %v933
  %967 = vst.msk [vmem:[%s2 + $0xa8] sm:$0xff] %vm945, %v934
  %968 = vst.msk [vmem:[%s2 + $0xb0] sm:$0xff] %vm945, %v935
  %969 = vst.msk [vmem:[%s2 + $0xb8] sm:$0xff] %vm945, %v936
  %970 = vst.msk [vmem:[%s2 + $0xc0] sm:$0xff] %vm945, %v937
  %971 = vst.msk [vmem:[%s2 + $0xc8] sm:$0xff] %vm945, %v938
  %972 = vst.msk [vmem:[%s2 + $0xd0] sm:$0xff] %vm945, %v939
  %973 = vst.msk [vmem:[%s2 + $0xd8] sm:$0xff] %vm945, %v940
  %974 = vst.msk [vmem:[%s2 + $0xe0] sm:$0xff] %vm945, %v941
  %975 = vst.msk [vmem:[%s2 + $0xe8] sm:$0xff] %vm945, %v942
  %976 = vst.msk [vmem:[%s2 + $0xf0] sm:$0xff] %vm945, %v943
  %977 = vst.msk [vmem:[%s2 + $0xf8] sm:$0xff] %vm945, %v944
  // Predicated region
  $region10: #{lightgcn_forward.1} parent=0 // pred_check
    _
  $region11: #{lightgcn_forward.1} parent=0 // pred_check_branch
    %979 = sbr.rel (0) target = $region13
  $region12: #{lightgcn_forward.1} parent=0 // pred_region
    _
  $region13: #{lightgcn_forward.1} parent=0 // pred_fallthru
    _
  // Predicated region
  $region14: #{lightgcn_forward.1} parent=0 // pred_check
    _
  $region15: #{lightgcn_forward.1} parent=0 // pred_check_branch
    %981 = sbr.rel (0) target = $region17
  $region16: #{lightgcn_forward.1} parent=0 // pred_region
    _
  $region17: #{lightgcn_forward.1} parent=0 // pred_fallthru
    _

</llo_original>
